<compile_context>
chip_gen: v6e
topology: v6e:2x2x1
jax: 0.10.0
libtpu: 0.0.40
codegen_flags: <defaults>
</compile_context>

<pallas_src>
import functools

import jax
import jax.numpy as jnp
from jax.experimental import pallas as pl
from jax.experimental.pallas import tpu as pltpu


def _channel_attention_kernel(x_ref, w1_ref, w2_ref, o_ref, sum_acc, max_acc, *,
                              hw_tile, hw_total, inv_hw, mask_partial):
    # x_ref: (b_tile, C, hw_tile)   w1_ref: (Cr, C)   w2_ref: (C, Cr)
    # o_ref: (b_tile, C)            sum_acc/max_acc: (b_tile, C) f32 scratch
    k = pl.program_id(1)
    n_hw = pl.num_programs(1)

    @pl.when(k == 0)
    def _init():
        sum_acc[...] = jnp.zeros_like(sum_acc)
        max_acc[...] = jnp.full_like(max_acc, -jnp.inf)

    # Stream the tile in its native dtype; accumulate into f32 scratch.
    x = x_ref[...]

    if mask_partial:
        # Last tile may extend past H*W: mask sum with 0 and max with -inf.
        lane = jax.lax.broadcasted_iota(jnp.int32, x.shape, dimension=2)
        valid = (lane + k * hw_tile) < hw_total
        x_sum = jnp.where(valid, x, jnp.zeros((), dtype=x.dtype))
        x_max = jnp.where(valid, x, jnp.asarray(-jnp.inf, dtype=x.dtype))
    else:
        x_sum = x
        x_max = x

    sum_acc[...] += jnp.sum(x_sum, axis=-1, dtype=jnp.float32)
    max_acc[...] = jnp.maximum(max_acc[...],
                               jnp.max(x_max, axis=-1).astype(jnp.float32))

    @pl.when(k == n_hw - 1)
    def _finalize():
        avg = sum_acc[...] * jnp.float32(inv_hw)   # single multiply, no per-step divide
        mx = max_acc[...]
        bt = avg.shape[0]

        # Shared MLP, one stacked pass over both pooled matrices: (2*b_tile, C).
        p = jnp.concatenate([avg, mx], axis=0)
        w1 = w1_ref[...].astype(jnp.float32)       # (Cr, C)
        w2 = w2_ref[...].astype(jnp.float32)       # (C, Cr)

        # fc1: contract C with C (== p @ w1.T without materializing a transpose)
        h = jax.lax.dot_general(p, w1, (((1,), (1,)), ((), ())),
                                preferred_element_type=jnp.float32)   # (2b, Cr)
        h = jnp.maximum(h, 0.0)
        # fc2: contract Cr with Cr (== h @ w2.T)
        y = jax.lax.dot_general(h, w2, (((1,), (1,)), ((), ())),
                                preferred_element_type=jnp.float32)   # (2b, C)

        out = jax.nn.sigmoid(y[:bt] + y[bt:])
        # NOTE: for C < 128 this is a masked vst; real CBAM C >= 128 is lane-dense.
        o_ref[...] = out.astype(o_ref.dtype)


def channel_attention(x, w1, w2, *, max_hw_tile=2048,
                      stream_budget_bytes=16 * 1024 * 1024):
    """x: (B, C, H, W); w1: (C//r, C); w2: (C, C//r). Returns (B, C, 1, 1)."""
    B, C, H, W = x.shape
    HW = H * W
    Cr, _ = w1.shape
    x3 = x.reshape(B, C, HW)

    # Batch tile: either a multiple of 8 (sublane-aligned) or the full batch.
    b_tile = 8 if (B % 8 == 0) else B
    n_b = B // b_tile

    # HW tile: largest multiple of 128 lanes s.t. the double-buffered input
    # stream stays under the budget (conservative for v7x's 64 MiB VMEM),
    # capped at max_hw_tile to amortize per-step overhead without waste.
    dtype_bytes = jnp.dtype(x.dtype).itemsize
    max_lanes = max(128, stream_budget_bytes // (2 * b_tile * C * dtype_bytes))
    cap = max(128, (min(max_lanes, max_hw_tile) // 128) * 128)
    hw_tile = HW if HW <= cap else cap          # full extent or multiple of 128

    n_hw = pl.cdiv(HW, hw_tile)
    mask_partial = (HW % hw_tile) != 0

    kernel = functools.partial(
        _channel_attention_kernel,
        hw_tile=hw_tile, hw_total=HW, inv_hw=1.0 / float(HW),
        mask_partial=mask_partial)

    out = pl.pallas_call(
        kernel,
        out_shape=jax.ShapeDtypeStruct((B, C), x.dtype),
        grid_spec=pltpu.PrefetchScalarGridSpec(
            num_scalar_prefetch=0,
            grid=(n_b, n_hw),
            in_specs=[
                pl.BlockSpec((b_tile, C, hw_tile), lambda b, k: (b, 0, k)),
                pl.BlockSpec((Cr, C), lambda b, k: (0, 0)),
                pl.BlockSpec((C, Cr), lambda b, k: (0, 0)),
            ],
            out_specs=pl.BlockSpec((b_tile, C), lambda b, k: (b, 0)),
            scratch_shapes=[
                pltpu.VMEM((b_tile, C), jnp.float32),   # running sum
                pltpu.VMEM((b_tile, C), jnp.float32),   # running max
            ],
        ),
        compiler_params=pltpu.CompilerParams(
            dimension_semantics=("parallel", "arbitrary"),
            vmem_limit_bytes=48 * 1024 * 1024,
        ),
    )(x3, w1, w2)

    return out.reshape(B, C, 1, 1)


def reference(x, w1, w2):
    """Pure-JAX reference of the PyTorch forward (for sanity checking)."""
    avg = jnp.mean(x, axis=(2, 3))
    mx = jnp.max(x, axis=(2, 3))

    def mlp(p):
        h = jnp.maximum(p @ w1.T, 0.0)
        return h @ w2.T

    return jax.nn.sigmoid(mlp(avg) + mlp(mx))[:, :, None, None]


if __name__ == "__main__":
    # Small shapes consistent with the module (in_planes >= ratio).
    # H=W=18 -> HW=324, which is NOT a multiple of 128: exercises the masked
    # remainder tile when tiling is forced below.
    B, C, H, W = 2, 64, 18, 18
    ratio = 16
    Cr = C // ratio

    key = jax.random.PRNGKey(0)
    kx, k1, k2 = jax.random.split(key, 3)

    x = jax.random.normal(kx, (B, C, H, W), dtype=jnp.float32)
    w1 = jax.random.normal(k1, (Cr, C), dtype=jnp.float32) * (1.0 / jnp.sqrt(C))
    w2 = jax.random.normal(k2, (C, Cr), dtype=jnp.float32) * (1.0 / jnp.sqrt(Cr))

    # Force several 128-lane HW tiles to exercise the pipelined reduction +
    # masked-remainder path even at this small test size.
    out_tiled = jax.block_until_ready(channel_attention(x, w1, w2, max_hw_tile=128))

    # Auto tile sizing (single full-extent block at this small size).
    out_auto = jax.block_until_ready(channel_attention(x, w1, w2))

    ref = reference(x, w1, w2)
    assert out_tiled.shape == (B, C, 1, 1)
    assert jnp.allclose(out_tiled, ref, atol=1e-5, rtol=1e-5), "tiled mismatch vs reference"
    assert jnp.allclose(out_auto, ref, atol=1e-5, rtol=1e-5), "auto mismatch vs reference"

    print("KERNEL_OK")
</pallas_src>

<mosaic_0001>
module attributes {stable_mosaic.version = 11 : i64} {
  func.func @_channel_attention_kernel(%arg0: i32, %arg1: i32, %arg2: memref<2x64x128xf32, #tpu.memory_space<vmem>>, %arg3: memref<4x64xf32, #tpu.memory_space<vmem>>, %arg4: memref<64x4xf32, #tpu.memory_space<vmem>>, %arg5: memref<2x64xf32, #tpu.memory_space<vmem>>, %arg6: memref<2x64xf32, #tpu.memory_space<vmem>>, %arg7: memref<2x64xf32, #tpu.memory_space<vmem>>) attributes {dimension_semantics = [#tpu.dimension_semantics<parallel>, #tpu.dimension_semantics<arbitrary>], iteration_bounds = array<i64: 1, 3>, scalar_prefetch = 0 : i64, scratch_operands = 2 : i64, tpu.core_type = #tpu.core_type<tc>, window_params = [{transform_indices = @transform_0, window_bounds = array<i64: 2, 64, 128>}, {pipeline_mode = #tpu.pipeline_mode<synchronous>, transform_indices = @transform_1, window_bounds = array<i64: 4, 64>}, {pipeline_mode = #tpu.pipeline_mode<synchronous>, transform_indices = @transform_2, window_bounds = array<i64: 64, 4>}, {transform_indices = @transform_3, window_bounds = array<i64: 2, 64>}]} {
    %c0_i32 = arith.constant 0 : i32
    %0 = arith.cmpi eq, %arg1, %c0_i32 : i32
    %1 = arith.extui %0 : i1 to i32
    %c0_i32_0 = arith.constant 0 : i32
    %2 = arith.cmpi ne, %1, %c0_i32_0 : i32
    scf.if %2 {
      %cst_15 = arith.constant 0.000000e+00 : f32
      %25 = vector.broadcast %cst_15 : f32 to vector<2x64xf32>
      %c0_16 = arith.constant 0 : index
      %c0_17 = arith.constant 0 : index
      %26 = vector.load %arg6[%c0_16, %c0_17] : memref<2x64xf32, #tpu.memory_space<vmem>>, vector<2x64xf32>
      tpu.vector_store %arg6[%c0_16, %c0_17], %25 {strides = array<i32>} : memref<2x64xf32, #tpu.memory_space<vmem>>, vector<2x64xf32>,
      %cst_18 = arith.constant 0xFF800000 : f32
      %27 = vector.broadcast %cst_18 : f32 to vector<2x64xf32>
      %c0_19 = arith.constant 0 : index
      %c0_20 = arith.constant 0 : index
      %28 = vector.load %arg7[%c0_19, %c0_20] : memref<2x64xf32, #tpu.memory_space<vmem>>, vector<2x64xf32>
      tpu.vector_store %arg7[%c0_19, %c0_20], %27 {strides = array<i32>} : memref<2x64xf32, #tpu.memory_space<vmem>>, vector<2x64xf32>,
    } else {
    }
    %c0 = arith.constant 0 : index
    %c0_1 = arith.constant 0 : index
    %c0_2 = arith.constant 0 : index
    %3 = vector.load %arg2[%c0, %c0_1, %c0_2] : memref<2x64x128xf32, #tpu.memory_space<vmem>>, vector<2x64x128xf32>
    %4 = tpu.iota {dimensions = array<i32: 2>} : vector<2x64x128xi32>
    %c128_i32 = arith.constant 128 : i32
    %5 = arith.muli %arg1, %c128_i32 : i32
    %6 = vector.broadcast %5 : i32 to vector<2x64x128xi32>
    %7 = arith.addi %4, %6 : vector<2x64x128xi32>
    %c324_i32 = arith.constant 324 : i32
    %8 = vector.broadcast %c324_i32 : i32 to vector<2x64x128xi32>
    %9 = arith.cmpi slt, %7, %8 : vector<2x64x128xi32>
    %cst = arith.constant 0.000000e+00 : f32
    %10 = vector.broadcast %cst : f32 to vector<2x64x128xf32>
    %11 = arith.select %9, %3, %10 : vector<2x64x128xi1>, vector<2x64x128xf32>
    %cst_3 = arith.constant 0xFF800000 : f32
    %12 = vector.broadcast %cst_3 : f32 to vector<2x64x128xf32>
    %13 = arith.select %9, %3, %12 : vector<2x64x128xi1>, vector<2x64x128xf32>
    %c0_4 = arith.constant 0 : index
    %c0_5 = arith.constant 0 : index
    %14 = vector.load %arg6[%c0_4, %c0_5] : memref<2x64xf32, #tpu.memory_space<vmem>>, vector<2x64xf32>
    %cst_6 = arith.constant dense<0.000000e+00> : vector<2x64xf32>
    %15 = vector.multi_reduction <add>, %11, %cst_6 [2] : vector<2x64x128xf32> to vector<2x64xf32>
    %16 = arith.addf %14, %15 : vector<2x64xf32>
    %c0_7 = arith.constant 0 : index
    %c0_8 = arith.constant 0 : index
    %17 = vector.load %arg6[%c0_7, %c0_8] : memref<2x64xf32, #tpu.memory_space<vmem>>, vector<2x64xf32>
    tpu.vector_store %arg6[%c0_7, %c0_8], %16 {strides = array<i32>} : memref<2x64xf32, #tpu.memory_space<vmem>>, vector<2x64xf32>,
    %c0_9 = arith.constant 0 : index
    %c0_10 = arith.constant 0 : index
    %18 = vector.load %arg7[%c0_9, %c0_10] : memref<2x64xf32, #tpu.memory_space<vmem>>, vector<2x64xf32>
    %cst_11 = arith.constant dense<0xFF800000> : vector<2x64xf32>
    %19 = vector.multi_reduction <maximumf>, %13, %cst_11 [2] : vector<2x64x128xf32> to vector<2x64xf32>
    %20 = arith.maximumf %18, %19 : vector<2x64xf32>
    %c0_12 = arith.constant 0 : index
    %c0_13 = arith.constant 0 : index
    %21 = vector.load %arg7[%c0_12, %c0_13] : memref<2x64xf32, #tpu.memory_space<vmem>>, vector<2x64xf32>
    tpu.vector_store %arg7[%c0_12, %c0_13], %20 {strides = array<i32>} : memref<2x64xf32, #tpu.memory_space<vmem>>, vector<2x64xf32>,
    %c2_i32 = arith.constant 2 : i32
    %22 = arith.cmpi eq, %arg1, %c2_i32 : i32
    %23 = arith.extui %22 : i1 to i32
    %c0_i32_14 = arith.constant 0 : i32
    %24 = arith.cmpi ne, %23, %c0_i32_14 : i32
    scf.if %24 {
      %c0_15 = arith.constant 0 : index
      %c0_16 = arith.constant 0 : index
      %25 = vector.load %arg6[%c0_15, %c0_16] : memref<2x64xf32, #tpu.memory_space<vmem>>, vector<2x64xf32>
      %cst_17 = arith.constant 0.00308641978 : f32
      %26 = vector.broadcast %cst_17 : f32 to vector<2x64xf32>
      %27 = arith.mulf %25, %26 : vector<2x64xf32>
      %c0_18 = arith.constant 0 : index
      %c0_19 = arith.constant 0 : index
      %28 = vector.load %arg7[%c0_18, %c0_19] : memref<2x64xf32, #tpu.memory_space<vmem>>, vector<2x64xf32>
      %29 = tpu.concatenate %27, %28 in 0 : vector<2x64xf32>, vector<2x64xf32> -> vector<4x64xf32>
      %c0_20 = arith.constant 0 : index
      %c0_21 = arith.constant 0 : index
      %30 = vector.load %arg3[%c0_20, %c0_21] : memref<4x64xf32, #tpu.memory_space<vmem>>, vector<4x64xf32>
      %c0_22 = arith.constant 0 : index
      %c0_23 = arith.constant 0 : index
      %31 = vector.load %arg4[%c0_22, %c0_23] : memref<64x4xf32, #tpu.memory_space<vmem>>, vector<64x4xf32>
      %cst_24 = arith.constant dense<0.000000e+00> : vector<4x4xf32>
      %32 = tpu.matmul %29, %30, %cst_24 {dimension_numbers = #tpu.dot_dimension_numbers<[1], [1], [0], [0], [0, 0, 1, 0], [], []>} : vector<4x64xf32>, vector<4x64xf32>, vector<4x4xf32> -> vector<4x4xf32>
      %cst_25 = arith.constant 0.000000e+00 : f32
      %33 = vector.broadcast %cst_25 : f32 to vector<4x4xf32>
      %34 = arith.maximumf %32, %33 : vector<4x4xf32>
      %cst_26 = arith.constant dense<0.000000e+00> : vector<4x64xf32>
      %35 = tpu.matmul %34, %31, %cst_26 {dimension_numbers = #tpu.dot_dimension_numbers<[1], [1], [0], [0], [0, 0, 1, 0], [], []>} : vector<4x4xf32>, vector<64x4xf32>, vector<4x64xf32> -> vector<4x64xf32>
      %36 = vector.extract_strided_slice %35 {offsets = [0, 0], sizes = [2, 64], strides = [1, 1]} : vector<4x64xf32> to vector<2x64xf32>
      %37 = vector.extract_strided_slice %35 {offsets = [2, 0], sizes = [2, 64], strides = [1, 1]} : vector<4x64xf32> to vector<2x64xf32>
      %38 = arith.addf %36, %37 : vector<2x64xf32>
      %39 = arith.negf %38 : vector<2x64xf32>
      %40 = math.exp %39 : vector<2x64xf32>
      %cst_27 = arith.constant 1.000000e+00 : f32
      %41 = vector.broadcast %cst_27 : f32 to vector<2x64xf32>
      %42 = arith.addf %41, %40 : vector<2x64xf32>
      %43 = arith.divf %41, %42 : vector<2x64xf32>
      %c0_28 = arith.constant 0 : index
      %c0_29 = arith.constant 0 : index
      %44 = vector.load %arg5[%c0_28, %c0_29] : memref<2x64xf32, #tpu.memory_space<vmem>>, vector<2x64xf32>
      tpu.vector_store %arg5[%c0_28, %c0_29], %43 {strides = array<i32>} : memref<2x64xf32, #tpu.memory_space<vmem>>, vector<2x64xf32>,
    } else {
    }
    return
  }
  func.func @transform_0(%arg0: i32, %arg1: i32) -> (i32, i32, i32) {
    %c0_i32 = arith.constant 0 : i32
    %c0_i32_0 = arith.constant 0 : i32
    return %arg0, %c0_i32, %arg1 : i32, i32, i32
  }
  func.func @transform_1(%arg0: i32, %arg1: i32) -> (i32, i32) {
    %c0_i32 = arith.constant 0 : i32
    %c0_i32_0 = arith.constant 0 : i32
    %c0_i32_1 = arith.constant 0 : i32
    return %c0_i32, %c0_i32_0 : i32, i32
  }
  func.func @transform_2(%arg0: i32, %arg1: i32) -> (i32, i32) {
    %c0_i32 = arith.constant 0 : i32
    %c0_i32_0 = arith.constant 0 : i32
    %c0_i32_1 = arith.constant 0 : i32
    return %c0_i32, %c0_i32_0 : i32, i32
  }
  func.func @transform_3(%arg0: i32, %arg1: i32) -> (i32, i32) {
    %c0_i32 = arith.constant 0 : i32
    %c0_i32_0 = arith.constant 0 : i32
    return %arg0, %c0_i32 : i32, i32
  }
}

</mosaic_0001>

<llo_original>
// kernel: tpu_custom_call.1
$region0: #{tpu_custom_call.1}
  #allocation0 [shape = 'u32[]', space=smem, size = 0x4, offset = 0x4, fixed_abs, tag = 'smem constant byte address 0x4 - core index']
  #allocation1 [shape = 'u32[144,128]{1,0:T(1,128)}', space=vmem, size = 0x12000, scoped, tag = 'internal scratch']
  #allocation2 [shape = 'f32[2,64]{1,0:T(2,128)}', space=vmem, size = 0x400, scoped, tag = 'scratch operand']
  #allocation3 [shape = 'f32[2,64]{1,0:T(2,128)}', space=vmem, size = 0x400, scoped, tag = 'scratch operand']
  %s0 = inlined_call_operand.hbm [shape: f32[2,64,324], index: 0, kind: input, shape index: {}]
  %s1 = inlined_call_operand.vmem [shape: f32[4,64], index: 1, kind: input, shape index: {}]
  %s2 = inlined_call_operand.vmem [shape: f32[64,4], index: 2, kind: input, shape index: {}]
  %s3 = inlined_call_operand.hbm [shape: f32[2,64], index: 3, kind: output, shape index: {}]
  %s4 = sld [smem:[#allocation0]]
  $region57: #{tpu_custom_call.1} parent=0
    _
  %s6 = ssub.s32 1, %s4
  %s7 = scalar_select 0, %s6, %s4
  $region1: #{tpu_custom_call.1} parent=0
    #allocation4 [shape = 'u8[131072]{0}', space=vmem, size = 0x20000, scoped, tag = 'input window, operand 0']
    #allocation5 [shape = 's32[2]{0}', space=sflag, size = 0x8, scoped, tag = 'scoped memory for tpu_custom_call.1']
    #allocation6 [shape = 's32[2]{0}', space=sflag, size = 0x8, scoped, tag = 'scoped memory for tpu_custom_call.1']
    #allocation7 [shape = 'u8[1024]{0}', space=vmem, size = 0x400, scoped, tag = 'output window, operand 0, single buffered']
    %8 = vsyncpa [#allocation5], 0
    %s9 = scalar_lea.sflag [#allocation5], 1
    %10 = vsyncpa %s9, 0
    %11 = vsyncpa [#allocation6], 0
    loop: start=0, step=1, limit=5
    $region2: #{tpu_custom_call.1} parent=1 // loop_pre_header
      _
    $region3: #{tpu_custom_call.1} parent=1 // loop_header
      %s13 = sphi 0, %s17
      %p14 = scmp.ge.s32.totalorder %s13, 5
      %s20 = sphi 0, %s32
      %s21 = sphi 0, %s28
      %s22 = sphi 0, %s20
      %s23 = sphi 0, %s21
      %s24 = sphi 0, %s22
      %s25 = sphi 0, %s23
      %s37 = sphi 0, %s39
      %s40 = sphi 0, %s37
      %s41 = sphi 0, %s40
      %s57 = sphi 0, %s41
      %s61 = sphi 0, %s61
      %s63 = sphi 0, %s61
      %s64 = sphi 0, %s63
      %s78 = sphi 0, %s64
      %s82 = sphi 0, %s82
      %s84 = sphi 0, %s82
      %s85 = sphi 0, %s84
      %s99 = sphi 0, %s85
      %s105 = sphi 0, %s107
      %s108 = sphi 0, %s105
      %s109 = sphi 0, %s108
      %s125 = sphi 0, %s109
    $region4: #{tpu_custom_call.1} parent=1 // loop_header_branch
      %16 = sbr.rel (%p14) target = $region8
    $region5: #{tpu_custom_call.1} parent=1 // loop_body
      %s18 = ssub.s32 %s13, 1
      %s19 = ssub.s32 %s13, 2
      %s26 = sadd.s32 1, %s21
      %p27 = scmp.ge.s32.totalorder %s26, 3
      %s28 = scalar_select %p27, 0, %s26
      %s29 = sadd.s32 1, %s20
      %s30 = scalar_select %p27, %s29, %s20
      %p31 = scmp.ge.s32.totalorder %s30, 1
      %s32 = scalar_select %p31, 0, %s30
      %s33 = ssub.s32 %s20, %s32
      %s34 = ssub.s32 %s21, %s28
      %s35 = sor.u32 %s33, %s34
      %p36 = scmp.eq.s32.totalorder %s35, 0
      %s38 = sadd.s32 %s37, 1
      %s39 = scalar_select %p36, %s37, %s38
      %p42 = pneg %p36
      %p43 = scmp.eq.s32.totalorder %s13, 2
      %p44 = por %p42, %p43
      %p45 = scmp.ne.s32.totalorder %s37, %s40
      %p46 = scmp.eq.s32.totalorder %s13, 0
      %p47 = por %p45, %p46
      %p48 = scmp.ne.s32.totalorder %s37, %s40
      %p49 = scmp.eq.s32.totalorder %s18, 2
      %p50 = por %p48, %p49
      %p51 = scmp.ne.s32.totalorder %s40, %s41
      %p52 = scmp.eq.s32.totalorder %s18, 0
      %p53 = por %p51, %p52
      %p54 = scmp.ne.s32.totalorder %s40, %s41
      %p55 = scmp.eq.s32.totalorder %s19, 2
      %p56 = por %p54, %p55
      %p58 = scmp.ne.s32.totalorder %s41, %s57
      %p59 = scmp.eq.s32.totalorder %s19, 0
      %p60 = por %p58, %p59
      %s62 = sadd.s32 %s61, 1
      %p65 = scmp.eq.s32.totalorder %s13, 2
      %p66 = scmp.ne.s32.totalorder %s61, %s63
      %p67 = scmp.eq.s32.totalorder %s13, 0
      %p68 = por %p66, %p67
      %p69 = scmp.ne.s32.totalorder %s61, %s63
      %p70 = scmp.eq.s32.totalorder %s18, 2
      %p71 = por %p69, %p70
      %p72 = scmp.ne.s32.totalorder %s63, %s64
      %p73 = scmp.eq.s32.totalorder %s18, 0
      %p74 = por %p72, %p73
      %p75 = scmp.ne.s32.totalorder %s63, %s64
      %p76 = scmp.eq.s32.totalorder %s19, 2
      %p77 = por %p75, %p76
      %p79 = scmp.ne.s32.totalorder %s64, %s78
      %p80 = scmp.eq.s32.totalorder %s19, 0
      %p81 = por %p79, %p80
      %s83 = sadd.s32 %s82, 1
      %p86 = scmp.eq.s32.totalorder %s13, 2
      %p87 = scmp.ne.s32.totalorder %s82, %s84
      %p88 = scmp.eq.s32.totalorder %s13, 0
      %p89 = por %p87, %p88
      %p90 = scmp.ne.s32.totalorder %s82, %s84
      %p91 = scmp.eq.s32.totalorder %s18, 2
      %p92 = por %p90, %p91
      %p93 = scmp.ne.s32.totalorder %s84, %s85
      %p94 = scmp.eq.s32.totalorder %s18, 0
      %p95 = por %p93, %p94
      %p96 = scmp.ne.s32.totalorder %s84, %s85
      %p97 = scmp.eq.s32.totalorder %s19, 2
      %p98 = por %p96, %p97
      %p100 = scmp.ne.s32.totalorder %s85, %s99
      %p101 = scmp.eq.s32.totalorder %s19, 0
      %p102 = por %p100, %p101
      %s103 = ssub.s32 %s20, %s32
      %p104 = scmp.eq.s32.totalorder %s103, 0
      %s106 = sadd.s32 %s105, 1
      %s107 = scalar_select %p104, %s105, %s106
      %p110 = pneg %p104
      %p111 = scmp.eq.s32.totalorder %s13, 2
      %p112 = por %p110, %p111
      %p113 = scmp.ne.s32.totalorder %s105, %s108
      %p114 = scmp.eq.s32.totalorder %s13, 0
      %p115 = por %p113, %p114
      %p116 = scmp.ne.s32.totalorder %s105, %s108
      %p117 = scmp.eq.s32.totalorder %s18, 2
      %p118 = por %p116, %p117
      %p119 = scmp.ne.s32.totalorder %s108, %s109
      %p120 = scmp.eq.s32.totalorder %s18, 0
      %p121 = por %p119, %p120
      %p122 = scmp.ne.s32.totalorder %s108, %s109
      %p123 = scmp.eq.s32.totalorder %s19, 2
      %p124 = por %p122, %p123
      %p126 = scmp.ne.s32.totalorder %s109, %s125
      %p127 = scmp.eq.s32.totalorder %s19, 0
      %p128 = por %p126, %p127
      %p129 = scmp.le.s32.totalorder 1, %s13
      %p130 = scmp.lt.s32.totalorder %s13, 4
      %p131 = pnand %p129, %p130
      %p132 = pneg %p131
      // Predicated region
      $region9: #{tpu_custom_call.1} parent=5 // pred_check
        _
      $region10: #{tpu_custom_call.1} parent=5 // pred_check_branch
        %134 = sbr.rel (%p131) target = $region12
      $region11: #{tpu_custom_call.1} parent=5 // pred_region
        %s135 = ssub.s32 %s13, 1
        // Predicated region
        $region13: #{tpu_custom_call.1} parent=11 // pred_check
          %p136 = pneg %p74
        $region14: #{tpu_custom_call.1} parent=11 // pred_check_branch
          %138 = sbr.rel (%p136) target = $region16
        $region15: #{tpu_custom_call.1} parent=11 // pred_region
          _
        $region16: #{tpu_custom_call.1} parent=11 // pred_fallthru
          _
        // Predicated region
        $region17: #{tpu_custom_call.1} parent=11 // pred_check
          %p139 = pneg %p95
        $region18: #{tpu_custom_call.1} parent=11 // pred_check_branch
          %141 = sbr.rel (%p139) target = $region20
        $region19: #{tpu_custom_call.1} parent=11 // pred_region
          _
        $region20: #{tpu_custom_call.1} parent=11 // pred_fallthru
          _
      $region12: #{tpu_custom_call.1} parent=5 // pred_fallthru
        _
      %p142 = scmp.lt.s32.totalorder %s13, 3
      // Predicated region
      $region21: #{tpu_custom_call.1} parent=5 // pred_check
        %p143 = pneg %p142
      $region22: #{tpu_custom_call.1} parent=5 // pred_check_branch
        %145 = sbr.rel (%p143) target = $region24
      $region23: #{tpu_custom_call.1} parent=5 // pred_region
        // Predicated region
        $region25: #{tpu_custom_call.1} parent=23 // pred_check
          %p146 = pneg %p47
        $region26: #{tpu_custom_call.1} parent=23 // pred_check_branch
          %148 = sbr.rel (%p146) target = $region28
        $region27: #{tpu_custom_call.1} parent=23 // pred_region
          %s149 = sand.u32 %s37, 1
          %s150 = scalar_lea.sflag [#allocation5], %s149
          %s151 = sand.u32 %s37, 1
          %s152 = smul.addr %s151, 128
          %s153 = scalar_lea.vmem [#allocation4], %s152
          %s154 = smul.u32 2, %s20
          %s156 = ssub.s32 2048, 2048
          %157 = vsyncadd %s150, %s156
          %s158 = smul.addr %s154, 24
          %s159 = sadd.s32 %s21, %s158
          %s160 = smul.addr %s159, 128
          %s161 = scalar_lea.hbm %s0, %s160
          %s162 = sshll.u32 %s153, 4
          %s163 = int_to_ptr.vmem [resolvable:$true] %s162
          %168 = dma.hbm_to_vmem [thread:$0]  %s161, 2048, %s163, %s150, 384, 128, 8
        $region28: #{tpu_custom_call.1} parent=23 // pred_fallthru
          _
      $region24: #{tpu_custom_call.1} parent=5 // pred_fallthru
        _
      %p169 = scmp.le.s32.totalorder 1, %s13
      %p170 = scmp.lt.s32.totalorder %s13, 4
      %p171 = pnand %p169, %p170
      %p172 = pneg %p171
      // Predicated region
      $region29: #{tpu_custom_call.1} parent=5 // pred_check
        _
      $region30: #{tpu_custom_call.1} parent=5 // pred_check_branch
        %174 = sbr.rel (%p171) target = $region32
      $region31: #{tpu_custom_call.1} parent=5 // pred_region
        %s175 = ssub.s32 %s13, 1
        %s176 = sand.u32 %s40, 1
        %s177 = scalar_lea.sflag [#allocation5], %s176
        %s178 = sand.u32 %s40, 1
        %s179 = smul.addr %s178, 128
        %s180 = scalar_lea.vmem [#allocation4], %s179
        // Predicated region
        $region33: #{tpu_custom_call.1} parent=31 // pred_check
          %p181 = pneg %p53
        $region34: #{tpu_custom_call.1} parent=31 // pred_check_branch
          %183 = sbr.rel (%p181) target = $region36
        $region35: #{tpu_custom_call.1} parent=31 // pred_region
          %184 = dma.done %s177, 2048
        $region36: #{tpu_custom_call.1} parent=31 // pred_fallthru
          _
        %s185 = sand.u32 %s40, 1
        %s186 = scalar_lea.sflag [#allocation5], %s185
        %s187 = sand.u32 %s40, 1
        %s188 = smul.addr %s187, 128
        %s189 = scalar_lea.vmem [#allocation4], %s188
        %p190 = pneg %p53
        %p191 = pneg %p50
        %p192 = pneg %p74
        %p193 = pneg %p71
        %p194 = pneg %p95
        %p195 = pneg %p92
        %p196 = pneg %p121
        %p197 = pneg %p118
        %s198 = smul.u32 2, %s22
        %p199 = scmp.eq.s32.totalorder %s23, 0
        // Predicated region
        $region37: #{tpu_custom_call.1} parent=31 // pred_check
          %p200 = pneg %p199
        $region38: #{tpu_custom_call.1} parent=31 // pred_check_branch
          %202 = sbr.rel (%p200) target = $region40
        $region39: #{tpu_custom_call.1} parent=31 // pred_region
          %vm203 = vcmask 517120
          %204 = vst.msk [vmem:[#allocation2] sm:$0x3] %vm203, 0.0
          %205 = vst.msk [vmem:[#allocation3] sm:$0x3] %vm203, -inf
        $region40: #{tpu_custom_call.1} parent=31 // pred_fallthru
          _
        %v206 = vld [vmem:[%s180] sm:$0xff]
        %v207 = vld [vmem:[%s180 + $0x8] sm:$0xff]
        %v208 = vld [vmem:[%s180 + $0x10] sm:$0xff]
        %v209 = vld [vmem:[%s180 + $0x18] sm:$0xff]
        %v210 = vld [vmem:[%s180 + $0x20] sm:$0xff]
        %v211 = vld [vmem:[%s180 + $0x28] sm:$0xff]
        %v212 = vld [vmem:[%s180 + $0x30] sm:$0xff]
        %v213 = vld [vmem:[%s180 + $0x38] sm:$0xff]
        %v214 = vld [vmem:[%s180 + $0x40] sm:$0xff]
        %v215 = vld [vmem:[%s180 + $0x48] sm:$0xff]
        %v216 = vld [vmem:[%s180 + $0x50] sm:$0xff]
        %v217 = vld [vmem:[%s180 + $0x58] sm:$0xff]
        %v218 = vld [vmem:[%s180 + $0x60] sm:$0xff]
        %v219 = vld [vmem:[%s180 + $0x68] sm:$0xff]
        %v220 = vld [vmem:[%s180 + $0x70] sm:$0xff]
        %v221 = vld [vmem:[%s180 + $0x78] sm:$0xff]
        %v222 = vlaneseq
        %v223 = vand.u32 %v222, 127
        %s224 = smul.u32 %s23, 128
        %v225 = vstv %s224
        %v226 = vadd.s32 %v223, %v225
        %vm227 = vcmp.lt.s32.totalorder %v226, 324
        %v228 = vsel %vm227, %v206, 0.0
        %v229 = vsel %vm227, %v207, 0.0
        %v230 = vsel %vm227, %v208, 0.0
        %v231 = vsel %vm227, %v209, 0.0
        %v232 = vsel %vm227, %v210, 0.0
        %v233 = vsel %vm227, %v211, 0.0
        %v234 = vsel %vm227, %v212, 0.0
        %v235 = vsel %vm227, %v213, 0.0
        %v236 = vsel %vm227, %v214, 0.0
        %v237 = vsel %vm227, %v215, 0.0
        %v238 = vsel %vm227, %v216, 0.0
        %v239 = vsel %vm227, %v217, 0.0
        %v240 = vsel %vm227, %v218, 0.0
        %v241 = vsel %vm227, %v219, 0.0
        %v242 = vsel %vm227, %v220, 0.0
        %v243 = vsel %vm227, %v221, 0.0
        %v244 = vsel %vm227, %v206, -inf
        %v245 = vsel %vm227, %v207, -inf
        %v246 = vsel %vm227, %v208, -inf
        %v247 = vsel %vm227, %v209, -inf
        %v248 = vsel %vm227, %v210, -inf
        %v249 = vsel %vm227, %v211, -inf
        %v250 = vsel %vm227, %v212, -inf
        %v251 = vsel %vm227, %v213, -inf
        %v252 = vsel %vm227, %v214, -inf
        %v253 = vsel %vm227, %v215, -inf
        %v254 = vsel %vm227, %v216, -inf
        %v255 = vsel %vm227, %v217, -inf
        %v256 = vsel %vm227, %v218, -inf
        %v257 = vsel %vm227, %v219, -inf
        %v258 = vsel %vm227, %v220, -inf
        %v259 = vsel %vm227, %v221, -inf
        %v260 = vld [vmem:[#allocation2] sm:$0x3]
        %261 = vadd.xlane.f32.xlu0 %v228
        %v262 = vpop.xlane.xlu0 %261
        %263 = vadd.xlane.f32.xlu0 %v229
        %v264 = vpop.xlane.xlu0 %263
        %265 = vadd.xlane.f32.xlu0 %v230
        %v266 = vpop.xlane.xlu0 %265
        %267 = vadd.xlane.f32.xlu0 %v231
        %v268 = vpop.xlane.xlu0 %267
        %269 = vadd.xlane.f32.xlu0 %v232
        %v270 = vpop.xlane.xlu0 %269
        %271 = vadd.xlane.f32.xlu0 %v233
        %v272 = vpop.xlane.xlu0 %271
        %273 = vadd.xlane.f32.xlu0 %v234
        %v274 = vpop.xlane.xlu0 %273
        %275 = vadd.xlane.f32.xlu0 %v235
        %v276 = vpop.xlane.xlu0 %275
        %277 = vadd.xlane.f32.xlu0 %v236
        %v278 = vpop.xlane.xlu0 %277
        %279 = vadd.xlane.f32.xlu0 %v237
        %v280 = vpop.xlane.xlu0 %279
        %281 = vadd.xlane.f32.xlu0 %v238
        %v282 = vpop.xlane.xlu0 %281
        %283 = vadd.xlane.f32.xlu0 %v239
        %v284 = vpop.xlane.xlu0 %283
        %285 = vadd.xlane.f32.xlu0 %v240
        %v286 = vpop.xlane.xlu0 %285
        %287 = vadd.xlane.f32.xlu0 %v241
        %v288 = vpop.xlane.xlu0 %287
        %289 = vadd.xlane.f32.xlu0 %v242
        %v290 = vpop.xlane.xlu0 %289
        %291 = vadd.xlane.f32.xlu0 %v243
        %v292 = vpop.xlane.xlu0 %291
        %v309 = vlaneseq
        %v310 = vshrl.u32 %v309, 7
        %v311 = vsub.s32 %v223, %v310
        %v312 = vrot.slane %v262, %v311
        %v313 = vadd.s32 %v223, 4294967288
        %v314 = vlaneseq
        %v315 = vshrl.u32 %v314, 7
        %v316 = vsub.s32 %v313, %v315
        %v317 = vrot.slane %v264, %v316
        %vm318 = vcmask 130112
        %v319 = vsel %vm318, %v317, %v312
        %v320 = vadd.s32 %v223, 4294967280
        %v321 = vlaneseq
        %v322 = vshrl.u32 %v321, 7
        %v323 = vsub.s32 %v320, %v322
        %v324 = vrot.slane %v266, %v323
        %vm325 = vcmask 195712
        %v326 = vsel %vm325, %v324, %v319
        %v327 = vadd.s32 %v223, 4294967272
        %v328 = vlaneseq
        %v329 = vshrl.u32 %v328, 7
        %v330 = vsub.s32 %v327, %v329
        %v331 = vrot.slane %v268, %v330
        %vm332 = vcmask 261312
        %v333 = vsel %vm332, %v331, %v326
        %v334 = vadd.s32 %v223, 4294967264
        %v335 = vlaneseq
        %v336 = vshrl.u32 %v335, 7
        %v337 = vsub.s32 %v334, %v336
        %v338 = vrot.slane %v270, %v337
        %vm339 = vcmask 326912
        %v340 = vsel %vm339, %v338, %v333
        %v341 = vadd.s32 %v223, 4294967256
        %v342 = vlaneseq
        %v343 = vshrl.u32 %v342, 7
        %v344 = vsub.s32 %v341, %v343
        %v345 = vrot.slane %v272, %v344
        %vm346 = vcmask 392512
        %v347 = vsel %vm346, %v345, %v340
        %v348 = vadd.s32 %v223, 4294967248
        %v349 = vlaneseq
        %v350 = vshrl.u32 %v349, 7
        %v351 = vsub.s32 %v348, %v350
        %v352 = vrot.slane %v274, %v351
        %vm353 = vcmask 458112
        %v354 = vsel %vm353, %v352, %v347
        %v355 = vadd.s32 %v223, 4294967240
        %v356 = vlaneseq
        %v357 = vshrl.u32 %v356, 7
        %v358 = vsub.s32 %v355, %v357
        %v359 = vrot.slane %v276, %v358
        %vm360 = vcmask 523712
        %v361 = vsel %vm360, %v359, %v354
        %v362 = vlaneseq
        %v363 = vshrl.u32 %v362, 7
        %v364 = vsub.s32 %v223, %v363
        %v365 = vrot.slane %v278, %v364
        %v366 = vlaneseq
        %v367 = vshrl.u32 %v366, 7
        %v368 = vsub.s32 %v313, %v367
        %v369 = vrot.slane %v280, %v368
        %v370 = vsel %vm318, %v369, %v365
        %v371 = vlaneseq
        %v372 = vshrl.u32 %v371, 7
        %v373 = vsub.s32 %v320, %v372
        %v374 = vrot.slane %v282, %v373
        %v375 = vsel %vm325, %v374, %v370
        %v376 = vlaneseq
        %v377 = vshrl.u32 %v376, 7
        %v378 = vsub.s32 %v327, %v377
        %v379 = vrot.slane %v284, %v378
        %v380 = vsel %vm332, %v379, %v375
        %v381 = vlaneseq
        %v382 = vshrl.u32 %v381, 7
        %v383 = vsub.s32 %v334, %v382
        %v384 = vrot.slane %v286, %v383
        %v385 = vsel %vm339, %v384, %v380
        %v386 = vlaneseq
        %v387 = vshrl.u32 %v386, 7
        %v388 = vsub.s32 %v341, %v387
        %v389 = vrot.slane %v288, %v388
        %v390 = vsel %vm346, %v389, %v385
        %v391 = vlaneseq
        %v392 = vshrl.u32 %v391, 7
        %v393 = vsub.s32 %v348, %v392
        %v394 = vrot.slane %v290, %v393
        %v395 = vsel %vm353, %v394, %v390
        %v396 = vlaneseq
        %v397 = vshrl.u32 %v396, 7
        %v398 = vsub.s32 %v355, %v397
        %v399 = vrot.slane %v292, %v398
        %v400 = vsel %vm360, %v399, %v395
        %vm401 = vcmask 1041409
        %v402 = vsel %vm401, %v400, %v361
        %v404 = vadd.f32 %v260, %v402
        %vm405 = vcmask 517120
        %406 = vst.msk [vmem:[#allocation2] sm:$0x3] %vm405, %v404
        %v407 = vld [vmem:[#allocation3] sm:$0x3]
        %408 = vmax.xlane.f32.xlu0 %v244
        %v409 = vpop.xlane.xlu0 %408
        %410 = vmax.xlane.f32.xlu0 %v245
        %v411 = vpop.xlane.xlu0 %410
        %412 = vmax.xlane.f32.xlu0 %v246
        %v413 = vpop.xlane.xlu0 %412
        %414 = vmax.xlane.f32.xlu0 %v247
        %v415 = vpop.xlane.xlu0 %414
        %416 = vmax.xlane.f32.xlu0 %v248
        %v417 = vpop.xlane.xlu0 %416
        %418 = vmax.xlane.f32.xlu0 %v249
        %v419 = vpop.xlane.xlu0 %418
        %420 = vmax.xlane.f32.xlu0 %v250
        %v421 = vpop.xlane.xlu0 %420
        %422 = vmax.xlane.f32.xlu0 %v251
        %v423 = vpop.xlane.xlu0 %422
        %424 = vmax.xlane.f32.xlu0 %v252
        %v425 = vpop.xlane.xlu0 %424
        %426 = vmax.xlane.f32.xlu0 %v253
        %v427 = vpop.xlane.xlu0 %426
        %428 = vmax.xlane.f32.xlu0 %v254
        %v429 = vpop.xlane.xlu0 %428
        %430 = vmax.xlane.f32.xlu0 %v255
        %v431 = vpop.xlane.xlu0 %430
        %432 = vmax.xlane.f32.xlu0 %v256
        %v433 = vpop.xlane.xlu0 %432
        %434 = vmax.xlane.f32.xlu0 %v257
        %v435 = vpop.xlane.xlu0 %434
        %436 = vmax.xlane.f32.xlu0 %v258
        %v437 = vpop.xlane.xlu0 %436
        %438 = vmax.xlane.f32.xlu0 %v259
        %v439 = vpop.xlane.xlu0 %438
        %v456 = vlaneseq
        %v457 = vshrl.u32 %v456, 7
        %v458 = vsub.s32 %v223, %v457
        %v459 = vrot.slane %v409, %v458
        %v460 = vlaneseq
        %v461 = vshrl.u32 %v460, 7
        %v462 = vsub.s32 %v313, %v461
        %v463 = vrot.slane %v411, %v462
        %v464 = vsel %vm318, %v463, %v459
        %v465 = vlaneseq
        %v466 = vshrl.u32 %v465, 7
        %v467 = vsub.s32 %v320, %v466
        %v468 = vrot.slane %v413, %v467
        %v469 = vsel %vm325, %v468, %v464
        %v470 = vlaneseq
        %v471 = vshrl.u32 %v470, 7
        %v472 = vsub.s32 %v327, %v471
        %v473 = vrot.slane %v415, %v472
        %v474 = vsel %vm332, %v473, %v469
        %v475 = vlaneseq
        %v476 = vshrl.u32 %v475, 7
        %v477 = vsub.s32 %v334, %v476
        %v478 = vrot.slane %v417, %v477
        %v479 = vsel %vm339, %v478, %v474
        %v480 = vlaneseq
        %v481 = vshrl.u32 %v480, 7
        %v482 = vsub.s32 %v341, %v481
        %v483 = vrot.slane %v419, %v482
        %v484 = vsel %vm346, %v483, %v479
        %v485 = vlaneseq
        %v486 = vshrl.u32 %v485, 7
        %v487 = vsub.s32 %v348, %v486
        %v488 = vrot.slane %v421, %v487
        %v489 = vsel %vm353, %v488, %v484
        %v490 = vlaneseq
        %v491 = vshrl.u32 %v490, 7
        %v492 = vsub.s32 %v355, %v491
        %v493 = vrot.slane %v423, %v492
        %v494 = vsel %vm360, %v493, %v489
        %v495 = vlaneseq
        %v496 = vshrl.u32 %v495, 7
        %v497 = vsub.s32 %v223, %v496
        %v498 = vrot.slane %v425, %v497
        %v499 = vlaneseq
        %v500 = vshrl.u32 %v499, 7
        %v501 = vsub.s32 %v313, %v500
        %v502 = vrot.slane %v427, %v501
        %v503 = vsel %vm318, %v502, %v498
        %v504 = vlaneseq
        %v505 = vshrl.u32 %v504, 7
        %v506 = vsub.s32 %v320, %v505
        %v507 = vrot.slane %v429, %v506
        %v508 = vsel %vm325, %v507, %v503
        %v509 = vlaneseq
        %v510 = vshrl.u32 %v509, 7
        %v511 = vsub.s32 %v327, %v510
        %v512 = vrot.slane %v431, %v511
        %v513 = vsel %vm332, %v512, %v508
        %v514 = vlaneseq
        %v515 = vshrl.u32 %v514, 7
        %v516 = vsub.s32 %v334, %v515
        %v517 = vrot.slane %v433, %v516
        %v518 = vsel %vm339, %v517, %v513
        %v519 = vlaneseq
        %v520 = vshrl.u32 %v519, 7
        %v521 = vsub.s32 %v341, %v520
        %v522 = vrot.slane %v435, %v521
        %v523 = vsel %vm346, %v522, %v518
        %v524 = vlaneseq
        %v525 = vshrl.u32 %v524, 7
        %v526 = vsub.s32 %v348, %v525
        %v527 = vrot.slane %v437, %v526
        %v528 = vsel %vm353, %v527, %v523
        %v529 = vlaneseq
        %v530 = vshrl.u32 %v529, 7
        %v531 = vsub.s32 %v355, %v530
        %v532 = vrot.slane %v439, %v531
        %v533 = vsel %vm360, %v532, %v528
        %v534 = vsel %vm401, %v533, %v494
        %v536 = vmax.f32 %v407, %v534
        %537 = vst.msk [vmem:[#allocation3] sm:$0x3] %vm405, %v536
        %p538 = scmp.eq.s32.totalorder %s23, 2
        // Predicated region
        $region41: #{tpu_custom_call.1} parent=31 // pred_check
          %p539 = pneg %p538
        $region42: #{tpu_custom_call.1} parent=31 // pred_check_branch
          %541 = sbr.rel (%p539) target = $region44
        $region43: #{tpu_custom_call.1} parent=31 // pred_region
          %v542 = vld [vmem:[#allocation2] sm:$0x3]
          %v543 = vmul.f32 %v542, 0.0030864198
          %v544 = vld [vmem:[#allocation3] sm:$0x3]
          %v546 = vrot.slane %v544, 6
          %vm548 = vcmask 1041408
          %v549 = vsel %vm548, %v543, %v546
          %v550 = vld [vmem:[%s1] sm:$0xf]
          %v551 = vld [vmem:[%s2] sm:$0xff]
          %v552 = vld [vmem:[%s2 + $0x8] sm:$0xff]
          %v553 = vld [vmem:[%s2 + $0x10] sm:$0xff]
          %v554 = vld [vmem:[%s2 + $0x18] sm:$0xff]
          %v555 = vld [vmem:[%s2 + $0x20] sm:$0xff]
          %v556 = vld [vmem:[%s2 + $0x28] sm:$0xff]
          %v557 = vld [vmem:[%s2 + $0x30] sm:$0xff]
          %v558 = vld [vmem:[%s2 + $0x38] sm:$0xff]
          %vm559 = vcmask 523264
          %v561 = vsel %vm559, %v549, 0
          %v564 = vsel %vm559, %v550, 0
          %566 = vmatprep.subr.mxu0 0.0
          %567 = vmatpush1.xpose.msra.mxu0 0.0
          %568 = vmatprep.subr.mxu0 0.0
          %569 = vmatpush1.xpose.msra.mxu0 0.0
          %570 = vmatprep.subr.mxu0 0.0
          %571 = vmatpush1.xpose.msra.mxu0 0.0
          %572 = vmatprep.subr.mxu0 0.0
          %573 = vmatpush1.xpose.msra.mxu0 0.0
          %574 = vmatprep.subr.mxu0 0.0
          %575 = vmatpush1.xpose.msra.mxu0 0.0
          %576 = vmatprep.subr.mxu0 0.0
          %577 = vmatpush1.xpose.msra.mxu0 0.0
          %578 = vmatprep.subr.mxu0 0.0
          %579 = vmatpush1.xpose.msra.mxu0 0.0
          %580 = vmatprep.subr.mxu0 0.0
          %581 = vmatpush1.xpose.msra.mxu0 0.0
          %582 = vmatprep.subr.mxu0 0.0
          %583 = vmatpush1.xpose.msra.mxu0 0.0
          %584 = vmatprep.subr.mxu0 0.0
          %585 = vmatpush1.xpose.msra.mxu0 0.0
          %586 = vmatprep.subr.mxu0 0.0
          %587 = vmatpush1.xpose.msra.mxu0 0.0
          %588 = vmatprep.subr.mxu0 0.0
          %589 = vmatpush1.xpose.msra.mxu0 0.0
          %590 = vmatprep.subr.mxu0 0.0
          %591 = vmatpush1.xpose.msra.mxu0 0.0
          %592 = vmatprep.subr.mxu0 0.0
          %593 = vmatpush1.xpose.msra.mxu0 0.0
          %594 = vmatprep.subr.mxu0 0.0
          %595 = vmatpush1.xpose.msra.mxu0 0.0
          %596 = vmatprep.subr.mxu0 0.0
          %597 = vmatpush1.xpose.msra.mxu0 %v564
          %598 = vmatprep.subr.mxu0 0.0
          %599 = vmatpush2.xpose.msra.mxu0 0.0
          %600 = vmatprep.subr.mxu0 0.0
          %601 = vmatpush2.xpose.msra.mxu0 0.0
          %602 = vmatprep.subr.mxu0 0.0
          %603 = vmatpush2.xpose.msra.mxu0 0.0
          %604 = vmatprep.subr.mxu0 0.0
          %605 = vmatpush2.xpose.msra.mxu0 0.0
          %606 = vmatprep.subr.mxu0 0.0
          %607 = vmatpush2.xpose.msra.mxu0 0.0
          %608 = vmatprep.subr.mxu0 0.0
          %609 = vmatpush2.xpose.msra.mxu0 0.0
          %610 = vmatprep.subr.mxu0 0.0
          %611 = vmatpush2.xpose.msra.mxu0 0.0
          %612 = vmatprep.subr.mxu0 0.0
          %613 = vmatpush2.xpose.msra.mxu0 0.0
          %614 = vmatprep.subr.mxu0 0.0
          %615 = vmatpush2.xpose.msra.mxu0 0.0
          %616 = vmatprep.subr.mxu0 0.0
          %617 = vmatpush2.xpose.msra.mxu0 0.0
          %618 = vmatprep.subr.mxu0 0.0
          %619 = vmatpush2.xpose.msra.mxu0 0.0
          %620 = vmatprep.subr.mxu0 0.0
          %621 = vmatpush2.xpose.msra.mxu0 0.0
          %622 = vmatprep.subr.mxu0 0.0
          %623 = vmatpush2.xpose.msra.mxu0 0.0
          %624 = vmatprep.subr.mxu0 0.0
          %625 = vmatpush2.xpose.msra.mxu0 0.0
          %626 = vmatprep.subr.mxu0 0.0
          %627 = vmatpush2.xpose.msra.mxu0 0.0
          %628 = vmatprep.subr.mxu0 0.0
          %629 = vmatpush2.xpose.msra.mxu0 0.0
          %630 = vmatprep.mubr.f32.mxu0 0.0
          %631 = vmatmul.mubr.f32.gmra.mxu0 %v561
          %v632 = vpop.f32.mrf.mxu0
          %v633 = vadd.f32 0.0, %v632
          %v634 = vpop.f32.mrf.mxu0
          %635 = vdwg.mxu0
          %v636 = vmax.f32 %v633, 0.0
          %vm637 = vcmask 31744
          %v639 = vsel %vm637, %v636, 0
          %v642 = vsel %vm637, %v551, 0
          %v645 = vsel %vm637, %v552, 0
          %v648 = vsel %vm637, %v553, 0
          %v651 = vsel %vm637, %v554, 0
          %v654 = vsel %vm637, %v555, 0
          %v657 = vsel %vm637, %v556, 0
          %v660 = vsel %vm637, %v557, 0
          %v663 = vsel %vm637, %v558, 0
          %665 = vmatprep.subr.mxu0 0.0
          %666 = vmatpush1.xpose.msra.mxu0 0.0
          %667 = vmatprep.subr.mxu0 0.0
          %668 = vmatpush1.xpose.msra.mxu0 0.0
          %669 = vmatprep.subr.mxu0 0.0
          %670 = vmatpush1.xpose.msra.mxu0 0.0
          %671 = vmatprep.subr.mxu0 0.0
          %672 = vmatpush1.xpose.msra.mxu0 0.0
          %673 = vmatprep.subr.mxu0 0.0
          %674 = vmatpush1.xpose.msra.mxu0 0.0
          %675 = vmatprep.subr.mxu0 0.0
          %676 = vmatpush1.xpose.msra.mxu0 0.0
          %677 = vmatprep.subr.mxu0 0.0
          %678 = vmatpush1.xpose.msra.mxu0 0.0
          %679 = vmatprep.subr.mxu0 0.0
          %680 = vmatpush1.xpose.msra.mxu0 0.0
          %681 = vmatprep.subr.mxu0 0.0
          %682 = vmatpush1.xpose.msra.mxu0 %v663
          %683 = vmatprep.subr.mxu0 0.0
          %684 = vmatpush1.xpose.msra.mxu0 %v660
          %685 = vmatprep.subr.mxu0 0.0
          %686 = vmatpush1.xpose.msra.mxu0 %v657
          %687 = vmatprep.subr.mxu0 0.0
          %688 = vmatpush1.xpose.msra.mxu0 %v654
          %689 = vmatprep.subr.mxu0 0.0
          %690 = vmatpush1.xpose.msra.mxu0 %v651
          %691 = vmatprep.subr.mxu0 0.0
          %692 = vmatpush1.xpose.msra.mxu0 %v648
          %693 = vmatprep.subr.mxu0 0.0
          %694 = vmatpush1.xpose.msra.mxu0 %v645
          %695 = vmatprep.subr.mxu0 0.0
          %696 = vmatpush1.xpose.msra.mxu0 %v642
          %697 = vmatprep.subr.mxu0 0.0
          %698 = vmatpush2.xpose.msra.mxu0 0.0
          %699 = vmatprep.subr.mxu0 0.0
          %700 = vmatpush2.xpose.msra.mxu0 0.0
          %701 = vmatprep.subr.mxu0 0.0
          %702 = vmatpush2.xpose.msra.mxu0 0.0
          %703 = vmatprep.subr.mxu0 0.0
          %704 = vmatpush2.xpose.msra.mxu0 0.0
          %705 = vmatprep.subr.mxu0 0.0
          %706 = vmatpush2.xpose.msra.mxu0 0.0
          %707 = vmatprep.subr.mxu0 0.0
          %708 = vmatpush2.xpose.msra.mxu0 0.0
          %709 = vmatprep.subr.mxu0 0.0
          %710 = vmatpush2.xpose.msra.mxu0 0.0
          %711 = vmatprep.subr.mxu0 0.0
          %712 = vmatpush2.xpose.msra.mxu0 0.0
          %713 = vmatprep.subr.mxu0 0.0
          %714 = vmatpush2.xpose.msra.mxu0 0.0
          %715 = vmatprep.subr.mxu0 0.0
          %716 = vmatpush2.xpose.msra.mxu0 0.0
          %717 = vmatprep.subr.mxu0 0.0
          %718 = vmatpush2.xpose.msra.mxu0 0.0
          %719 = vmatprep.subr.mxu0 0.0
          %720 = vmatpush2.xpose.msra.mxu0 0.0
          %721 = vmatprep.subr.mxu0 0.0
          %722 = vmatpush2.xpose.msra.mxu0 0.0
          %723 = vmatprep.subr.mxu0 0.0
          %724 = vmatpush2.xpose.msra.mxu0 0.0
          %725 = vmatprep.subr.mxu0 0.0
          %726 = vmatpush2.xpose.msra.mxu0 0.0
          %727 = vmatprep.subr.mxu0 0.0
          %728 = vmatpush2.xpose.msra.mxu0 0.0
          %729 = vmatprep.mubr.f32.mxu0 0.0
          %730 = vmatmul.mubr.f32.gmra.mxu0 %v639
          %v731 = vpop.f32.mrf.mxu0
          %v732 = vadd.f32 0.0, %v731
          %v733 = vpop.f32.mrf.mxu0
          %734 = vdwg.mxu0
          %v736 = vrot.slane %v732, 2
          %v738 = vadd.f32 %v732, %v736
          %v739 = vxor.u32 %v738, 2147483648
          %v740 = vmul.f32 %v739, 1.442695
          %v741 = vpow.pop %v740
          %v742 = vadd.f32 %v741, 1.0
          %v743 = vrcp.pop %v742
          %v744 = vmul.f32 1.0, %v743
          %745 = vst.msk [vmem:[#allocation7] sm:$0x3] %vm405, %v744
        $region44: #{tpu_custom_call.1} parent=31 // pred_fallthru
          _
        // Predicated region
        $region45: #{tpu_custom_call.1} parent=31 // pred_check
          %p746 = pneg %p118
        $region46: #{tpu_custom_call.1} parent=31 // pred_check_branch
          %748 = sbr.rel (%p746) target = $region48
        $region47: #{tpu_custom_call.1} parent=31 // pred_region
          %s750 = ssub.s32 32, 32
          %751 = vsyncadd [#allocation6], %s750
          %s752 = smul.addr %s22, 32
          %s753 = scalar_lea.hbm %s3, %s752
          %s755 = sshll.u32 [#allocation7], 4
          %s756 = int_to_ptr.vmem [resolvable:$true] %s755
          %758 = dma.vmem_to_hbm [thread:$0]  %s756, 32, %s753, [#allocation6]
        $region48: #{tpu_custom_call.1} parent=31 // pred_fallthru
          _
        // Predicated region
        $region49: #{tpu_custom_call.1} parent=31 // pred_check
          %p759 = pneg %p118
        $region50: #{tpu_custom_call.1} parent=31 // pred_check_branch
          %761 = sbr.rel (%p759) target = $region52
        $region51: #{tpu_custom_call.1} parent=31 // pred_region
          %762 = dma.done [#allocation6], 32
        $region52: #{tpu_custom_call.1} parent=31 // pred_fallthru
          _
      $region32: #{tpu_custom_call.1} parent=5 // pred_fallthru
        _
      %p763 = scmp.le.s32.totalorder 2, %s13
      // Predicated region
      $region53: #{tpu_custom_call.1} parent=5 // pred_check
        %p764 = pneg %p763
      $region54: #{tpu_custom_call.1} parent=5 // pred_check_branch
        %766 = sbr.rel (%p764) target = $region56
      $region55: #{tpu_custom_call.1} parent=5 // pred_region
        %s767 = ssub.s32 %s13, 2
      $region56: #{tpu_custom_call.1} parent=5 // pred_fallthru
        _
    $region6: #{tpu_custom_call.1} parent=1 // loop_footer
      %s17 = sadd.s32 1, %s13
    $region7: #{tpu_custom_call.1} parent=1 // loop_footer_branch
      %12 = sbr.rel target = $region3
    $region8: #{tpu_custom_call.1} parent=1 // loop_exit
      _
    %768 = vsyncpa [#allocation5], 1
    %s769 = scalar_lea.sflag [#allocation5], 1
    %770 = vsyncpa %s769, 1
    %771 = vsyncpa [#allocation6], 1
    %s772 = scalar_lea.sflag [#allocation6], 1
    %773 = vsyncpa %s772, 1

</llo_original>
